<compile_context>
chip_gen: v7x
topology: tpu7x:2x2x1
jax: 0.10.0
libtpu: 0.0.40
codegen_flags: <defaults>
</compile_context>

<pallas_src>
import math
from functools import partial

import jax
import jax.numpy as jnp
import numpy as np
from jax.experimental import pallas as pl
from jax.experimental.pallas import tpu as pltpu


def _sigmoid(x):
    return 1.0 / (1.0 + jnp.exp(-x))


def former_kernel(x_ref,
                  wqkv_ref, bqkv_ref, wfc_ref, bfc_ref,
                  g1_ref, beta1_ref, g2_ref, beta2_ref,
                  w1_ref, b1_ref, w2_ref, b2_ref, w3_ref, b3_ref,
                  out_ref,
                  *, N, L, dq, dk, dv, eps):
    dx = x_ref.shape[-1]
    inv_sqrt_dk = 1.0 / math.sqrt(dk)

    x = x_ref[...].astype(jnp.float32)                                   # (N*L, dx)

    # ---- fused Q|K|V projection: one (N*L, dx) @ (dx, dq+dk+dv) MXU matmul ----
    qkv = jnp.dot(x, wqkv_ref[...], preferred_element_type=jnp.float32) + bqkv_ref[...]
    q = qkv[:, :dq].reshape(N, L, dq)
    k = qkv[:, dq:dq + dk].reshape(N, L, dk)
    v = qkv[:, dq + dk:]                                                 # (N*L, dv)

    # ---- attention scores, batched over n (block-diagonal) ----
    a = jnp.einsum('nqd,nkd->nqk', q, k,
                   preferred_element_type=jnp.float32) * inv_sqrt_dk     # (N, L, L)
    a = a - jnp.max(a, axis=-1, keepdims=True)
    e = jnp.exp(a)
    p = e / jnp.sum(e, axis=-1, keepdims=True)                           # softmax (N, L, L)

    # torch.einsum('nqk,ncv->nqv', P, V): k and c are independent summed indices
    # -> rowsum(P) (outer) colsum(V).  Reproduced exactly (rowsum computed from P).
    row = jnp.sum(p, axis=-1, keepdims=True)                             # (N, L, 1)
    col = jnp.sum(v.reshape(N, L, dv), axis=1, keepdims=True)            # (N, 1, dv)
    o = (row * col).reshape(N * L, dv)                                   # (N*L, dv)

    att = jnp.dot(o, wfc_ref[...], preferred_element_type=jnp.float32) + bfc_ref[...]
    r1 = x + att                                                         # residual, stays in vregs

    # ---- BatchNorm1d #1 (training-mode biased batch stats over all N*L positions) ----
    mean1 = jnp.mean(r1, axis=0, keepdims=True)
    var1 = jnp.mean((r1 - mean1) ** 2, axis=0, keepdims=True)
    x1 = (r1 - mean1) * jax.lax.rsqrt(var1 + eps) * g1_ref[...] + beta1_ref[...]

    # ---- feedforward (Linear -> Sigmoid x3), batched over all N*L rows ----
    h = _sigmoid(jnp.dot(x1, w1_ref[...], preferred_element_type=jnp.float32) + b1_ref[...])
    h = _sigmoid(jnp.dot(h,  w2_ref[...], preferred_element_type=jnp.float32) + b2_ref[...])
    h = _sigmoid(jnp.dot(h,  w3_ref[...], preferred_element_type=jnp.float32) + b3_ref[...])
    r2 = h + x1

    # ---- BatchNorm1d #2 ----
    mean2 = jnp.mean(r2, axis=0, keepdims=True)
    var2 = jnp.mean((r2 - mean2) ** 2, axis=0, keepdims=True)
    x2 = (r2 - mean2) * jax.lax.rsqrt(var2 + eps) * g2_ref[...] + beta2_ref[...]

    # single-shot store (no per-n loop, no value slices of x2)
    out_ref[...] = x2.astype(out_ref.dtype)


def single_head_former(x, params, *, dq, dk, dv, eps=1e-5):
    (wq, bq, wk, bk, wv, bv, wfc, bfc,
     g1, be1, g2, be2, w1, b1, w2, b2, w3, b3) = params
    N, L, dx = x.shape

    # Fuse the three projection weights/biases once, outside the kernel.
    wqkv = jnp.concatenate([wq, wk, wv], axis=1)    # (dx, dq+dk+dv)
    bqkv = jnp.concatenate([bq, bk, bv], axis=1)    # (1,  dq+dk+dv)

    x2d = x.reshape(N * L, dx)                      # free row-major reshape in HBM

    args = (x2d, wqkv, bqkv, wfc, bfc, g1, be1, g2, be2,
            w1, b1, w2, b2, w3, b3)
    vmem = pl.BlockSpec(memory_space=pltpu.MemorySpace.VMEM)
    out2d = pl.pallas_call(
        partial(former_kernel, N=N, L=L, dq=dq, dk=dk, dv=dv, eps=eps),
        out_shape=jax.ShapeDtypeStruct((N * L, dx), x.dtype),
        in_specs=[vmem] * len(args),
        out_specs=vmem,
    )(*args)
    return out2d.reshape(N, L, dx)


# ---------------- pure-JAX reference (mirrors the PyTorch forward) ----------------
def reference(x, params, *, dk, eps=1e-5):
    (wq, bq, wk, bk, wv, bv, wfc, bfc,
     g1, be1, g2, be2, w1, b1, w2, b2, w3, b3) = params

    Q = x @ wq + bq
    K = x @ wk + bk
    V = x @ wv + bv
    A = jnp.einsum('nqc,nkc->nqk', Q, K) / math.sqrt(dk)
    P = jax.nn.softmax(A, axis=-1)
    out = jnp.einsum('nqk,ncv->nqv', P, V)           # quirky einsum, as in the original
    att = out @ wfc + bfc

    def bn(y, g, b):
        m = jnp.mean(y, axis=(0, 1), keepdims=True)
        v = jnp.mean((y - m) ** 2, axis=(0, 1), keepdims=True)
        return (y - m) / jnp.sqrt(v + eps) * g + b

    x1 = bn(x + att, g1, be1)
    h = jax.nn.sigmoid(x1 @ w1 + b1)
    h = jax.nn.sigmoid(h @ w2 + b2)
    h = jax.nn.sigmoid(h @ w3 + b3)
    x2 = bn(h + x1, g2, be2)
    return x2


def make_params(key, dx, dq, dk, dv, expansion):
    h1 = expansion * dx
    h2 = (expansion - 2) * dx

    def linear(key, fan_in, fan_out):
        k1, k2 = jax.random.split(key)
        s = 1.0 / math.sqrt(fan_in)
        w = jax.random.uniform(k1, (fan_in, fan_out), jnp.float32, -s, s)
        b = jax.random.uniform(k2, (1, fan_out), jnp.float32, -s, s)
        return w, b

    keys = jax.random.split(key, 9)
    wq, bq = linear(keys[0], dx, dq)
    wk, bk = linear(keys[1], dx, dk)
    wv, bv = linear(keys[2], dx, dv)
    wfc, bfc = linear(keys[3], dv, dx)
    w1, b1 = linear(keys[4], dx, h1)
    w2, b2 = linear(keys[5], h1, h2)
    w3, b3 = linear(keys[6], h2, dx)
    g1 = 1.0 + 0.1 * jax.random.normal(keys[7], (1, dx), jnp.float32)
    be1 = 0.1 * jax.random.normal(keys[7], (1, dx), jnp.float32)
    g2 = 1.0 + 0.1 * jax.random.normal(keys[8], (1, dx), jnp.float32)
    be2 = 0.1 * jax.random.normal(keys[8], (1, dx), jnp.float32)
    return (wq, bq, wk, bk, wv, bv, wfc, bfc,
            g1, be1, g2, be2, w1, b1, w2, b2, w3, b3)


if __name__ == "__main__":
    N, L = 2, 8
    dx, dq, dk, dv, expansion = 32, 16, 16, 16, 5   # dq == dk required by the einsum

    key = jax.random.PRNGKey(0)
    kx, kp = jax.random.split(key)
    x = jax.random.normal(kx, (N, L, dx), jnp.float32)
    params = make_params(kp, dx, dq, dk, dv, expansion)

    out = single_head_former(x, params, dq=dq, dk=dk, dv=dv)
    out = jax.block_until_ready(out)

    ref = reference(x, params, dk=dk)
    np.testing.assert_allclose(np.asarray(out), np.asarray(ref), rtol=2e-5, atol=2e-5)

    print("KERNEL_OK")
</pallas_src>

<mosaic_0001>
module attributes {stable_mosaic.version = 11 : i64} {
  func.func @former_kernel(%arg0: memref<16x32xf32, #tpu.memory_space<vmem>>, %arg1: memref<32x48xf32, #tpu.memory_space<vmem>>, %arg2: memref<1x48xf32, #tpu.memory_space<vmem>>, %arg3: memref<16x32xf32, #tpu.memory_space<vmem>>, %arg4: memref<1x32xf32, #tpu.memory_space<vmem>>, %arg5: memref<1x32xf32, #tpu.memory_space<vmem>>, %arg6: memref<1x32xf32, #tpu.memory_space<vmem>>, %arg7: memref<1x32xf32, #tpu.memory_space<vmem>>, %arg8: memref<1x32xf32, #tpu.memory_space<vmem>>, %arg9: memref<32x160xf32, #tpu.memory_space<vmem>>, %arg10: memref<1x160xf32, #tpu.memory_space<vmem>>, %arg11: memref<160x96xf32, #tpu.memory_space<vmem>>, %arg12: memref<1x96xf32, #tpu.memory_space<vmem>>, %arg13: memref<96x32xf32, #tpu.memory_space<vmem>>, %arg14: memref<1x32xf32, #tpu.memory_space<vmem>>, %arg15: memref<16x32xf32, #tpu.memory_space<vmem>>) attributes {dimension_semantics = [], scalar_prefetch = 0 : i64, scratch_operands = 0 : i64, tpu.core_type = #tpu.core_type<tc>} {
    %c0 = arith.constant 0 : index
    %c0_0 = arith.constant 0 : index
    %0 = vector.load %arg0[%c0, %c0_0] : memref<16x32xf32, #tpu.memory_space<vmem>>, vector<16x32xf32>
    %c0_1 = arith.constant 0 : index
    %c0_2 = arith.constant 0 : index
    %1 = vector.load %arg1[%c0_1, %c0_2] : memref<32x48xf32, #tpu.memory_space<vmem>>, vector<32x48xf32>
    %cst = arith.constant dense<0.000000e+00> : vector<16x48xf32>
    %2 = tpu.matmul %0, %1, %cst {dimension_numbers = #tpu.dot_dimension_numbers<[1], [0], [0], [1], [0, 0, 1, 1], [], []>} : vector<16x32xf32>, vector<32x48xf32>, vector<16x48xf32> -> vector<16x48xf32>
    %c0_3 = arith.constant 0 : index
    %c0_4 = arith.constant 0 : index
    %3 = vector.load %arg2[%c0_3, %c0_4] : memref<1x48xf32, #tpu.memory_space<vmem>>, vector<1x48xf32>
    %4 = vector.broadcast %3 : vector<1x48xf32> to vector<16x48xf32>
    %5 = arith.addf %2, %4 : vector<16x48xf32>
    %6 = vector.extract_strided_slice %5 {offsets = [0, 0], sizes = [16, 16], strides = [1, 1]} : vector<16x48xf32> to vector<16x16xf32>
    %7 = vector.shape_cast %6 : vector<16x16xf32> to vector<2x8x16xf32>
    %8 = vector.extract_strided_slice %5 {offsets = [0, 16], sizes = [16, 16], strides = [1, 1]} : vector<16x48xf32> to vector<16x16xf32>
    %9 = vector.shape_cast %8 : vector<16x16xf32> to vector<2x8x16xf32>
    %10 = vector.extract_strided_slice %5 {offsets = [0, 32], sizes = [16, 16], strides = [1, 1]} : vector<16x48xf32> to vector<16x16xf32>
    "tpu.trace_start"() <{level = 10 : i32, message = "nqd,nkd->nqk"}> : () -> ()
    %cst_5 = arith.constant dense<0.000000e+00> : vector<2x8x8xf32>
    %11 = tpu.matmul %7, %9, %cst_5 {dimension_numbers = #tpu.dot_dimension_numbers<[2], [2], [1], [1], [0, 0, 0, 1, 1, 1], [0], [0]>} : vector<2x8x16xf32>, vector<2x8x16xf32>, vector<2x8x8xf32> -> vector<2x8x8xf32>
    "tpu.trace_stop"() : () -> ()
    %cst_6 = arith.constant 2.500000e-01 : f32
    %12 = vector.broadcast %cst_6 : f32 to vector<2x8x8xf32>
    %13 = arith.mulf %11, %12 : vector<2x8x8xf32>
    %cst_7 = arith.constant dense<0xFF800000> : vector<2x8xf32>
    %14 = vector.multi_reduction <maximumf>, %13, %cst_7 [2] : vector<2x8x8xf32> to vector<2x8xf32>
    %15 = vector.shape_cast %14 : vector<2x8xf32> to vector<2x8x1xf32>
    %16 = vector.broadcast %15 : vector<2x8x1xf32> to vector<2x8x8xf32>
    %17 = arith.subf %13, %16 : vector<2x8x8xf32>
    %18 = math.exp %17 : vector<2x8x8xf32>
    %cst_8 = arith.constant dense<0.000000e+00> : vector<2x8xf32>
    %19 = vector.multi_reduction <add>, %18, %cst_8 [2] : vector<2x8x8xf32> to vector<2x8xf32>
    %20 = vector.shape_cast %19 : vector<2x8xf32> to vector<2x8x1xf32>
    %21 = vector.broadcast %20 : vector<2x8x1xf32> to vector<2x8x8xf32>
    %22 = arith.divf %18, %21 : vector<2x8x8xf32>
    %cst_9 = arith.constant dense<0.000000e+00> : vector<2x8xf32>
    %23 = vector.multi_reduction <add>, %22, %cst_9 [2] : vector<2x8x8xf32> to vector<2x8xf32>
    %24 = vector.shape_cast %23 : vector<2x8xf32> to vector<2x8x1xf32>
    %25 = vector.shape_cast %10 : vector<16x16xf32> to vector<2x8x16xf32>
    %cst_10 = arith.constant dense<0.000000e+00> : vector<2x16xf32>
    %26 = vector.multi_reduction <add>, %25, %cst_10 [1] : vector<2x8x16xf32> to vector<2x16xf32>
    %27 = vector.shape_cast %26 : vector<2x16xf32> to vector<2x1x16xf32>
    %28 = vector.broadcast %24 : vector<2x8x1xf32> to vector<2x8x16xf32>
    %29 = vector.broadcast %27 : vector<2x1x16xf32> to vector<2x8x16xf32>
    %30 = arith.mulf %28, %29 : vector<2x8x16xf32>
    %31 = vector.shape_cast %30 : vector<2x8x16xf32> to vector<16x16xf32>
    %c0_11 = arith.constant 0 : index
    %c0_12 = arith.constant 0 : index
    %32 = vector.load %arg3[%c0_11, %c0_12] : memref<16x32xf32, #tpu.memory_space<vmem>>, vector<16x32xf32>
    %cst_13 = arith.constant dense<0.000000e+00> : vector<16x32xf32>
    %33 = tpu.matmul %31, %32, %cst_13 {dimension_numbers = #tpu.dot_dimension_numbers<[1], [0], [0], [1], [0, 0, 1, 1], [], []>} : vector<16x16xf32>, vector<16x32xf32>, vector<16x32xf32> -> vector<16x32xf32>
    %c0_14 = arith.constant 0 : index
    %c0_15 = arith.constant 0 : index
    %34 = vector.load %arg4[%c0_14, %c0_15] : memref<1x32xf32, #tpu.memory_space<vmem>>, vector<1x32xf32>
    %35 = vector.broadcast %34 : vector<1x32xf32> to vector<16x32xf32>
    %36 = arith.addf %33, %35 : vector<16x32xf32>
    %37 = arith.addf %0, %36 : vector<16x32xf32>
    %cst_16 = arith.constant dense<0.000000e+00> : vector<32xf32>
    %38 = vector.multi_reduction <add>, %37, %cst_16 [0] : vector<16x32xf32> to vector<32xf32>
    %39 = vector.shape_cast %38 : vector<32xf32> to vector<1x32xf32>
    %cst_17 = arith.constant 1.600000e+01 : f32
    %40 = vector.broadcast %cst_17 : f32 to vector<1x32xf32>
    %41 = arith.divf %39, %40 : vector<1x32xf32>
    %42 = vector.broadcast %41 : vector<1x32xf32> to vector<16x32xf32>
    %43 = arith.subf %37, %42 : vector<16x32xf32>
    %44 = arith.mulf %43, %43 : vector<16x32xf32>
    %cst_18 = arith.constant dense<0.000000e+00> : vector<32xf32>
    %45 = vector.multi_reduction <add>, %44, %cst_18 [0] : vector<16x32xf32> to vector<32xf32>
    %46 = vector.shape_cast %45 : vector<32xf32> to vector<1x32xf32>
    %cst_19 = arith.constant 1.600000e+01 : f32
    %47 = vector.broadcast %cst_19 : f32 to vector<1x32xf32>
    %48 = arith.divf %46, %47 : vector<1x32xf32>
    %49 = vector.broadcast %41 : vector<1x32xf32> to vector<16x32xf32>
    %50 = arith.subf %37, %49 : vector<16x32xf32>
    %cst_20 = arith.constant 9.99999974E-6 : f32
    %51 = vector.broadcast %cst_20 : f32 to vector<1x32xf32>
    %52 = arith.addf %48, %51 : vector<1x32xf32>
    %53 = math.rsqrt %52 : vector<1x32xf32>
    %54 = vector.broadcast %53 : vector<1x32xf32> to vector<16x32xf32>
    %55 = arith.mulf %50, %54 : vector<16x32xf32>
    %c0_21 = arith.constant 0 : index
    %c0_22 = arith.constant 0 : index
    %56 = vector.load %arg5[%c0_21, %c0_22] : memref<1x32xf32, #tpu.memory_space<vmem>>, vector<1x32xf32>
    %57 = vector.broadcast %56 : vector<1x32xf32> to vector<16x32xf32>
    %58 = arith.mulf %55, %57 : vector<16x32xf32>
    %c0_23 = arith.constant 0 : index
    %c0_24 = arith.constant 0 : index
    %59 = vector.load %arg6[%c0_23, %c0_24] : memref<1x32xf32, #tpu.memory_space<vmem>>, vector<1x32xf32>
    %60 = vector.broadcast %59 : vector<1x32xf32> to vector<16x32xf32>
    %61 = arith.addf %58, %60 : vector<16x32xf32>
    %c0_25 = arith.constant 0 : index
    %c0_26 = arith.constant 0 : index
    %62 = vector.load %arg9[%c0_25, %c0_26] : memref<32x160xf32, #tpu.memory_space<vmem>>, vector<32x160xf32>
    %cst_27 = arith.constant dense<0.000000e+00> : vector<16x160xf32>
    %63 = tpu.matmul %61, %62, %cst_27 {dimension_numbers = #tpu.dot_dimension_numbers<[1], [0], [0], [1], [0, 0, 1, 1], [], []>} : vector<16x32xf32>, vector<32x160xf32>, vector<16x160xf32> -> vector<16x160xf32>
    %c0_28 = arith.constant 0 : index
    %c0_29 = arith.constant 0 : index
    %64 = vector.load %arg10[%c0_28, %c0_29] : memref<1x160xf32, #tpu.memory_space<vmem>>, vector<1x160xf32>
    %65 = vector.broadcast %64 : vector<1x160xf32> to vector<16x160xf32>
    %66 = arith.addf %63, %65 : vector<16x160xf32>
    %cst_30 = arith.constant 0.000000e+00 : f32
    %67 = vector.broadcast %cst_30 : f32 to vector<16x160xf32>
    %68 = arith.subf %67, %66 : vector<16x160xf32>
    %69 = math.exp %68 : vector<16x160xf32>
    %cst_31 = arith.constant 1.000000e+00 : f32
    %70 = vector.broadcast %cst_31 : f32 to vector<16x160xf32>
    %71 = arith.addf %70, %69 : vector<16x160xf32>
    %cst_32 = arith.constant 1.000000e+00 : f32
    %72 = vector.broadcast %cst_32 : f32 to vector<16x160xf32>
    %73 = arith.divf %72, %71 : vector<16x160xf32>
    %c0_33 = arith.constant 0 : index
    %c0_34 = arith.constant 0 : index
    %74 = vector.load %arg11[%c0_33, %c0_34] : memref<160x96xf32, #tpu.memory_space<vmem>>, vector<160x96xf32>
    %cst_35 = arith.constant dense<0.000000e+00> : vector<16x96xf32>
    %75 = tpu.matmul %73, %74, %cst_35 {dimension_numbers = #tpu.dot_dimension_numbers<[1], [0], [0], [1], [0, 0, 1, 1], [], []>} : vector<16x160xf32>, vector<160x96xf32>, vector<16x96xf32> -> vector<16x96xf32>
    %c0_36 = arith.constant 0 : index
    %c0_37 = arith.constant 0 : index
    %76 = vector.load %arg12[%c0_36, %c0_37] : memref<1x96xf32, #tpu.memory_space<vmem>>, vector<1x96xf32>
    %77 = vector.broadcast %76 : vector<1x96xf32> to vector<16x96xf32>
    %78 = arith.addf %75, %77 : vector<16x96xf32>
    %cst_38 = arith.constant 0.000000e+00 : f32
    %79 = vector.broadcast %cst_38 : f32 to vector<16x96xf32>
    %80 = arith.subf %79, %78 : vector<16x96xf32>
    %81 = math.exp %80 : vector<16x96xf32>
    %cst_39 = arith.constant 1.000000e+00 : f32
    %82 = vector.broadcast %cst_39 : f32 to vector<16x96xf32>
    %83 = arith.addf %82, %81 : vector<16x96xf32>
    %cst_40 = arith.constant 1.000000e+00 : f32
    %84 = vector.broadcast %cst_40 : f32 to vector<16x96xf32>
    %85 = arith.divf %84, %83 : vector<16x96xf32>
    %c0_41 = arith.constant 0 : index
    %c0_42 = arith.constant 0 : index
    %86 = vector.load %arg13[%c0_41, %c0_42] : memref<96x32xf32, #tpu.memory_space<vmem>>, vector<96x32xf32>
    %cst_43 = arith.constant dense<0.000000e+00> : vector<16x32xf32>
    %87 = tpu.matmul %85, %86, %cst_43 {dimension_numbers = #tpu.dot_dimension_numbers<[1], [0], [0], [1], [0, 0, 1, 1], [], []>} : vector<16x96xf32>, vector<96x32xf32>, vector<16x32xf32> -> vector<16x32xf32>
    %c0_44 = arith.constant 0 : index
    %c0_45 = arith.constant 0 : index
    %88 = vector.load %arg14[%c0_44, %c0_45] : memref<1x32xf32, #tpu.memory_space<vmem>>, vector<1x32xf32>
    %89 = vector.broadcast %88 : vector<1x32xf32> to vector<16x32xf32>
    %90 = arith.addf %87, %89 : vector<16x32xf32>
    %cst_46 = arith.constant 0.000000e+00 : f32
    %91 = vector.broadcast %cst_46 : f32 to vector<16x32xf32>
    %92 = arith.subf %91, %90 : vector<16x32xf32>
    %93 = math.exp %92 : vector<16x32xf32>
    %cst_47 = arith.constant 1.000000e+00 : f32
    %94 = vector.broadcast %cst_47 : f32 to vector<16x32xf32>
    %95 = arith.addf %94, %93 : vector<16x32xf32>
    %cst_48 = arith.constant 1.000000e+00 : f32
    %96 = vector.broadcast %cst_48 : f32 to vector<16x32xf32>
    %97 = arith.divf %96, %95 : vector<16x32xf32>
    %98 = arith.addf %97, %61 : vector<16x32xf32>
    %cst_49 = arith.constant dense<0.000000e+00> : vector<32xf32>
    %99 = vector.multi_reduction <add>, %98, %cst_49 [0] : vector<16x32xf32> to vector<32xf32>
    %100 = vector.shape_cast %99 : vector<32xf32> to vector<1x32xf32>
    %cst_50 = arith.constant 1.600000e+01 : f32
    %101 = vector.broadcast %cst_50 : f32 to vector<1x32xf32>
    %102 = arith.divf %100, %101 : vector<1x32xf32>
    %103 = vector.broadcast %102 : vector<1x32xf32> to vector<16x32xf32>
    %104 = arith.subf %98, %103 : vector<16x32xf32>
    %105 = arith.mulf %104, %104 : vector<16x32xf32>
    %cst_51 = arith.constant dense<0.000000e+00> : vector<32xf32>
    %106 = vector.multi_reduction <add>, %105, %cst_51 [0] : vector<16x32xf32> to vector<32xf32>
    %107 = vector.shape_cast %106 : vector<32xf32> to vector<1x32xf32>
    %cst_52 = arith.constant 1.600000e+01 : f32
    %108 = vector.broadcast %cst_52 : f32 to vector<1x32xf32>
    %109 = arith.divf %107, %108 : vector<1x32xf32>
    %110 = vector.broadcast %102 : vector<1x32xf32> to vector<16x32xf32>
    %111 = arith.subf %98, %110 : vector<16x32xf32>
    %cst_53 = arith.constant 9.99999974E-6 : f32
    %112 = vector.broadcast %cst_53 : f32 to vector<1x32xf32>
    %113 = arith.addf %109, %112 : vector<1x32xf32>
    %114 = math.rsqrt %113 : vector<1x32xf32>
    %115 = vector.broadcast %114 : vector<1x32xf32> to vector<16x32xf32>
    %116 = arith.mulf %111, %115 : vector<16x32xf32>
    %c0_54 = arith.constant 0 : index
    %c0_55 = arith.constant 0 : index
    %117 = vector.load %arg7[%c0_54, %c0_55] : memref<1x32xf32, #tpu.memory_space<vmem>>, vector<1x32xf32>
    %118 = vector.broadcast %117 : vector<1x32xf32> to vector<16x32xf32>
    %119 = arith.mulf %116, %118 : vector<16x32xf32>
    %c0_56 = arith.constant 0 : index
    %c0_57 = arith.constant 0 : index
    %120 = vector.load %arg8[%c0_56, %c0_57] : memref<1x32xf32, #tpu.memory_space<vmem>>, vector<1x32xf32>
    %121 = vector.broadcast %120 : vector<1x32xf32> to vector<16x32xf32>
    %122 = arith.addf %119, %121 : vector<16x32xf32>
    %c0_58 = arith.constant 0 : index
    %c0_59 = arith.constant 0 : index
    %123 = vector.load %arg15[%c0_58, %c0_59] : memref<16x32xf32, #tpu.memory_space<vmem>>, vector<16x32xf32>
    tpu.vector_store %arg15[%c0_58, %c0_59], %122 {strides = array<i32>} : memref<16x32xf32, #tpu.memory_space<vmem>>, vector<16x32xf32>,
    return
  }
}

</mosaic_0001>

<llo_original>
// kernel: tpu_custom_call.1
$region0: #{tpu_custom_call.1}
  #allocation0 [shape = 'u32[]', space=smem, size = 0x4, offset = 0x4, fixed_abs, tag = 'smem constant byte address 0x4 - core index']
  #allocation1 [shape = 'u32[144,128]{1,0:T(1,128)}', space=vmem, size = 0x12000, scoped, tag = 'internal scratch']
  %s0 = inlined_call_operand.hbm [shape: f32[16,32], index: 0, kind: input, shape index: {}]
  %s1 = inlined_call_operand.hbm [shape: f32[32,48], index: 1, kind: input, shape index: {}]
  %s2 = inlined_call_operand.vmem [shape: f32[1,48], index: 2, kind: input, shape index: {}]
  %s3 = inlined_call_operand.hbm [shape: f32[16,32], index: 3, kind: input, shape index: {}]
  %s4 = inlined_call_operand.vmem [shape: f32[1,32], index: 4, kind: input, shape index: {}]
  %s5 = inlined_call_operand.vmem [shape: f32[1,32], index: 5, kind: input, shape index: {}]
  %s6 = inlined_call_operand.vmem [shape: f32[1,32], index: 6, kind: input, shape index: {}]
  %s7 = inlined_call_operand.vmem [shape: f32[1,32], index: 7, kind: input, shape index: {}]
  %s8 = inlined_call_operand.vmem [shape: f32[1,32], index: 8, kind: input, shape index: {}]
  %s9 = inlined_call_operand.hbm [shape: f32[32,160], index: 9, kind: input, shape index: {}]
  %s10 = inlined_call_operand.vmem [shape: f32[1,160], index: 10, kind: input, shape index: {}]
  %s11 = inlined_call_operand.vmem [shape: f32[160,96], index: 11, kind: input, shape index: {}]
  %s12 = inlined_call_operand.vmem [shape: f32[1,96], index: 12, kind: input, shape index: {}]
  %s13 = inlined_call_operand.vmem [shape: f32[96,32], index: 13, kind: input, shape index: {}]
  %s14 = inlined_call_operand.vmem [shape: f32[1,32], index: 14, kind: input, shape index: {}]
  %s15 = inlined_call_operand.hbm [shape: f32[16,32], index: 15, kind: output, shape index: {}]
  %s16 = sld [smem:[#allocation0]]
  $region86: #{tpu_custom_call.1} parent=0
    _
  %s18 = ssub.s32 1, %s16
  %s19 = scalar_select 0, %s18, %s16
  $region1: #{tpu_custom_call.1} parent=0
    #allocation2 [shape = 'u8[8192]{0}', space=vmem, size = 0x2000, scoped, tag = 'input window, operand 0, single buffered']
    #allocation3 [shape = 's32[1]{0}', space=sflag, size = 0x4, scoped, tag = 'scoped memory for tpu_custom_call.1']
    #allocation4 [shape = 's32[1]{0}', space=sflag, size = 0x4, scoped, tag = 'scoped memory for tpu_custom_call.1']
    #allocation5 [shape = 'u8[16384]{0}', space=vmem, size = 0x4000, scoped, tag = 'input window, operand 1, single buffered']
    #allocation6 [shape = 's32[1]{0}', space=sflag, size = 0x4, scoped, tag = 'scoped memory for tpu_custom_call.1']
    #allocation7 [shape = 'u8[8192]{0}', space=vmem, size = 0x2000, scoped, tag = 'input window, operand 3, single buffered']
    #allocation8 [shape = 'u8[32768]{0}', space=vmem, size = 0x8000, scoped, tag = 'input window, operand 9, single buffered']
    #allocation9 [shape = 's32[1]{0}', space=sflag, size = 0x4, scoped, tag = 'scoped memory for tpu_custom_call.1']
    #allocation10 [shape = 'u8[8192]{0}', space=vmem, size = 0x2000, scoped, tag = 'output window, operand 0, single buffered']
    %20 = vsyncpa [#allocation3], 0
    %21 = vsyncpa [#allocation6], 0
    %22 = vsyncpa [#allocation9], 0
    %23 = vsyncpa [#allocation4], 0
    // Predicated region
    $region2: #{tpu_custom_call.1} parent=1 // pred_check
      _
    $region3: #{tpu_custom_call.1} parent=1 // pred_check_branch
      %25 = sbr.rel (0) target = $region5
    $region4: #{tpu_custom_call.1} parent=1 // pred_region
      %s27 = ssub.s32 256, 256
      %28 = vsyncadd [#allocation3], %s27
      %s29 = sshll.u32 [#allocation2], 4
      %s30 = int_to_ptr.vmem [resolvable:$true] %s29
      %35 = dma.hbm_to_vmem [thread:$0]  %s0, 256, %s30, [#allocation3], 128, 128, 8
    $region5: #{tpu_custom_call.1} parent=1 // pred_fallthru
      _
    // Predicated region
    $region6: #{tpu_custom_call.1} parent=1 // pred_check
      _
    $region7: #{tpu_custom_call.1} parent=1 // pred_check_branch
      %37 = sbr.rel (0) target = $region9
    $region8: #{tpu_custom_call.1} parent=1 // pred_region
      %s39 = ssub.s32 512, 512
      %40 = vsyncadd [#allocation6], %s39
      %s41 = sshll.u32 [#allocation5], 4
      %s42 = int_to_ptr.vmem [resolvable:$true] %s41
      %47 = dma.hbm_to_vmem [thread:$0]  %s1, 512, %s42, [#allocation6], 128, 128, 8
    $region9: #{tpu_custom_call.1} parent=1 // pred_fallthru
      _
    // Predicated region
    $region10: #{tpu_custom_call.1} parent=1 // pred_check
      _
    $region11: #{tpu_custom_call.1} parent=1 // pred_check_branch
      %49 = sbr.rel (0) target = $region13
    $region12: #{tpu_custom_call.1} parent=1 // pred_region
      _
    $region13: #{tpu_custom_call.1} parent=1 // pred_fallthru
      _
    // Predicated region
    $region14: #{tpu_custom_call.1} parent=1 // pred_check
      _
    $region15: #{tpu_custom_call.1} parent=1 // pred_check_branch
      %51 = sbr.rel (0) target = $region17
    $region16: #{tpu_custom_call.1} parent=1 // pred_region
      %s53 = ssub.s32 256, 256
      %54 = vsyncadd [#allocation6], %s53
      %s55 = sshll.u32 [#allocation7], 4
      %s56 = int_to_ptr.vmem [resolvable:$true] %s55
      %61 = dma.hbm_to_vmem [thread:$0]  %s3, 256, %s56, [#allocation6], 128, 128, 8
    $region17: #{tpu_custom_call.1} parent=1 // pred_fallthru
      _
    // Predicated region
    $region18: #{tpu_custom_call.1} parent=1 // pred_check
      _
    $region19: #{tpu_custom_call.1} parent=1 // pred_check_branch
      %63 = sbr.rel (0) target = $region21
    $region20: #{tpu_custom_call.1} parent=1 // pred_region
      _
    $region21: #{tpu_custom_call.1} parent=1 // pred_fallthru
      _
    // Predicated region
    $region22: #{tpu_custom_call.1} parent=1 // pred_check
      _
    $region23: #{tpu_custom_call.1} parent=1 // pred_check_branch
      %65 = sbr.rel (0) target = $region25
    $region24: #{tpu_custom_call.1} parent=1 // pred_region
      _
    $region25: #{tpu_custom_call.1} parent=1 // pred_fallthru
      _
    // Predicated region
    $region26: #{tpu_custom_call.1} parent=1 // pred_check
      _
    $region27: #{tpu_custom_call.1} parent=1 // pred_check_branch
      %67 = sbr.rel (0) target = $region29
    $region28: #{tpu_custom_call.1} parent=1 // pred_region
      _
    $region29: #{tpu_custom_call.1} parent=1 // pred_fallthru
      _
    // Predicated region
    $region30: #{tpu_custom_call.1} parent=1 // pred_check
      _
    $region31: #{tpu_custom_call.1} parent=1 // pred_check_branch
      %69 = sbr.rel (0) target = $region33
    $region32: #{tpu_custom_call.1} parent=1 // pred_region
      _
    $region33: #{tpu_custom_call.1} parent=1 // pred_fallthru
      _
    // Predicated region
    $region34: #{tpu_custom_call.1} parent=1 // pred_check
      _
    $region35: #{tpu_custom_call.1} parent=1 // pred_check_branch
      %71 = sbr.rel (0) target = $region37
    $region36: #{tpu_custom_call.1} parent=1 // pred_region
      _
    $region37: #{tpu_custom_call.1} parent=1 // pred_fallthru
      _
    // Predicated region
    $region38: #{tpu_custom_call.1} parent=1 // pred_check
      _
    $region39: #{tpu_custom_call.1} parent=1 // pred_check_branch
      %73 = sbr.rel (0) target = $region41
    $region40: #{tpu_custom_call.1} parent=1 // pred_region
      %s75 = ssub.s32 1024, 1024
      %76 = vsyncadd [#allocation9], %s75
      %s77 = sshll.u32 [#allocation8], 4
      %s78 = int_to_ptr.vmem [resolvable:$true] %s77
      %83 = dma.hbm_to_vmem [thread:$0]  %s9, 1024, %s78, [#allocation9], 256, 256, 16
    $region41: #{tpu_custom_call.1} parent=1 // pred_fallthru
      _
    // Predicated region
    $region42: #{tpu_custom_call.1} parent=1 // pred_check
      _
    $region43: #{tpu_custom_call.1} parent=1 // pred_check_branch
      %85 = sbr.rel (0) target = $region45
    $region44: #{tpu_custom_call.1} parent=1 // pred_region
      _
    $region45: #{tpu_custom_call.1} parent=1 // pred_fallthru
      _
    // Predicated region
    $region46: #{tpu_custom_call.1} parent=1 // pred_check
      _
    $region47: #{tpu_custom_call.1} parent=1 // pred_check_branch
      %87 = sbr.rel (0) target = $region49
    $region48: #{tpu_custom_call.1} parent=1 // pred_region
      _
    $region49: #{tpu_custom_call.1} parent=1 // pred_fallthru
      _
    // Predicated region
    $region50: #{tpu_custom_call.1} parent=1 // pred_check
      _
    $region51: #{tpu_custom_call.1} parent=1 // pred_check_branch
      %89 = sbr.rel (0) target = $region53
    $region52: #{tpu_custom_call.1} parent=1 // pred_region
      _
    $region53: #{tpu_custom_call.1} parent=1 // pred_fallthru
      _
    // Predicated region
    $region54: #{tpu_custom_call.1} parent=1 // pred_check
      _
    $region55: #{tpu_custom_call.1} parent=1 // pred_check_branch
      %91 = sbr.rel (0) target = $region57
    $region56: #{tpu_custom_call.1} parent=1 // pred_region
      _
    $region57: #{tpu_custom_call.1} parent=1 // pred_fallthru
      _
    // Predicated region
    $region58: #{tpu_custom_call.1} parent=1 // pred_check
      _
    $region59: #{tpu_custom_call.1} parent=1 // pred_check_branch
      %93 = sbr.rel (0) target = $region61
    $region60: #{tpu_custom_call.1} parent=1 // pred_region
      _
    $region61: #{tpu_custom_call.1} parent=1 // pred_fallthru
      _
    // Predicated region
    $region62: #{tpu_custom_call.1} parent=1 // pred_check
      _
    $region63: #{tpu_custom_call.1} parent=1 // pred_check_branch
      %95 = sbr.rel (0) target = $region65
    $region64: #{tpu_custom_call.1} parent=1 // pred_region
      %96 = dma.done [#allocation3], 256
    $region65: #{tpu_custom_call.1} parent=1 // pred_fallthru
      _
    // Predicated region
    $region66: #{tpu_custom_call.1} parent=1 // pred_check
      _
    $region67: #{tpu_custom_call.1} parent=1 // pred_check_branch
      %98 = sbr.rel (0) target = $region69
    $region68: #{tpu_custom_call.1} parent=1 // pred_region
      %99 = dma.done [#allocation6], 512
    $region69: #{tpu_custom_call.1} parent=1 // pred_fallthru
      _
    // Predicated region
    $region70: #{tpu_custom_call.1} parent=1 // pred_check
      _
    $region71: #{tpu_custom_call.1} parent=1 // pred_check_branch
      %101 = sbr.rel (0) target = $region73
    $region72: #{tpu_custom_call.1} parent=1 // pred_region
      %102 = dma.done [#allocation6], 256
    $region73: #{tpu_custom_call.1} parent=1 // pred_fallthru
      _
    // Predicated region
    $region74: #{tpu_custom_call.1} parent=1 // pred_check
      _
    $region75: #{tpu_custom_call.1} parent=1 // pred_check_branch
      %104 = sbr.rel (0) target = $region77
    $region76: #{tpu_custom_call.1} parent=1 // pred_region
      %105 = dma.done [#allocation9], 1024
    $region77: #{tpu_custom_call.1} parent=1 // pred_fallthru
      _
    %v106 = vld [vmem:[#allocation2] sm:$0xff]
    %v107 = vld [vmem:[#allocation2 + $0x8] sm:$0xff]
    %v108 = vld [vmem:[#allocation5] sm:$0xff]
    %v109 = vld [vmem:[#allocation5 + $0x8] sm:$0xff]
    %v110 = vld [vmem:[#allocation5 + $0x10] sm:$0xff]
    %v111 = vld [vmem:[#allocation5 + $0x18] sm:$0xff]
    %v112 = vld [vmem:[%s2] sm:$0x1]
    %v114 = vlaneseq
    %v115 = vshrl.u32 %v114, 7
    %v116 = vsub.s32 0, %v115
    %v117 = vrot.slane %v112, %v116
    %vm119 = vcmask 261120
    %v121 = vsel %vm119, %v106, 0
    %v124 = vsel %vm119, %v107, 0
    %126 = vmatprep.subr.mxu0 0.0
    %127 = vmatpush1.msra.mxu0 %v108
    %128 = vmatprep.subr.mxu0 0.0
    %129 = vmatpush1.msra.mxu0 %v109
    %130 = vmatprep.subr.mxu0 0.0
    %131 = vmatpush1.msra.mxu0 %v110
    %132 = vmatprep.subr.mxu0 0.0
    %133 = vmatpush1.msra.mxu0 %v111
    %134 = vmatprep.subr.mxu0 0.0
    %135 = vmatpush1.msra.mxu0 0.0
    %136 = vmatprep.subr.mxu0 0.0
    %137 = vmatpush1.msra.mxu0 0.0
    %138 = vmatprep.subr.mxu0 0.0
    %139 = vmatpush1.msra.mxu0 0.0
    %140 = vmatprep.subr.mxu0 0.0
    %141 = vmatpush1.msra.mxu0 0.0
    %142 = vmatprep.subr.mxu0 0.0
    %143 = vmatpush1.msra.mxu0 0.0
    %144 = vmatprep.subr.mxu0 0.0
    %145 = vmatpush1.msra.mxu0 0.0
    %146 = vmatprep.subr.mxu0 0.0
    %147 = vmatpush1.msra.mxu0 0.0
    %148 = vmatprep.subr.mxu0 0.0
    %149 = vmatpush1.msra.mxu0 0.0
    %150 = vmatprep.subr.mxu0 0.0
    %151 = vmatpush1.msra.mxu0 0.0
    %152 = vmatprep.subr.mxu0 0.0
    %153 = vmatpush1.msra.mxu0 0.0
    %154 = vmatprep.subr.mxu0 0.0
    %155 = vmatpush1.msra.mxu0 0.0
    %156 = vmatprep.subr.mxu0 0.0
    %157 = vmatpush1.msra.mxu0 0.0
    %158 = vmatprep.subr.mxu0 0.0
    %159 = vmatpush1.msra.mxu0 0.0
    %160 = vmatprep.subr.mxu0 0.0
    %161 = vmatpush1.msra.mxu0 0.0
    %162 = vmatprep.subr.mxu0 0.0
    %163 = vmatpush1.msra.mxu0 0.0
    %164 = vmatprep.subr.mxu0 0.0
    %165 = vmatpush1.msra.mxu0 0.0
    %166 = vmatprep.subr.mxu0 0.0
    %167 = vmatpush1.msra.mxu0 0.0
    %168 = vmatprep.subr.mxu0 0.0
    %169 = vmatpush1.msra.mxu0 0.0
    %170 = vmatprep.subr.mxu0 0.0
    %171 = vmatpush1.msra.mxu0 0.0
    %172 = vmatprep.subr.mxu0 0.0
    %173 = vmatpush1.msra.mxu0 0.0
    %174 = vmatprep.subr.mxu0 0.0
    %175 = vmatpush1.msra.mxu0 0.0
    %176 = vmatprep.subr.mxu0 0.0
    %177 = vmatpush1.msra.mxu0 0.0
    %178 = vmatprep.subr.mxu0 0.0
    %179 = vmatpush1.msra.mxu0 0.0
    %180 = vmatprep.subr.mxu0 0.0
    %181 = vmatpush1.msra.mxu0 0.0
    %182 = vmatprep.subr.mxu0 0.0
    %183 = vmatpush1.msra.mxu0 0.0
    %184 = vmatprep.subr.mxu0 0.0
    %185 = vmatpush1.msra.mxu0 0.0
    %186 = vmatprep.subr.mxu0 0.0
    %187 = vmatpush1.msra.mxu0 0.0
    %188 = vmatprep.subr.mxu0 0.0
    %189 = vmatpush1.msra.mxu0 0.0
    %190 = vmatprep.mubr.f32.mxu0 0.0
    %191 = vmatmul.mubr.f32.gmra.mrb[0].mxu0 %v121
    %v192 = vpop.f32.mrb[0].mxu0
    %v193 = vadd.f32 %v117, %v192
    %v194 = vpop.f32.mrb[0].mxu0
    %195 = vmatprep.mubr.f32.mxu0 0.0
    %196 = vmatmul.mubr.f32.gmra.mrb[0].mxu0 %v124
    %v197 = vpop.f32.mrb[0].mxu0
    %v198 = vadd.f32 %v117, %v197
    %v199 = vpop.f32.mrb[0].mxu0
    %200 = vdwg.mxu0
    %202 = vrot.lane.b32.xlu0 %v193, 112
    %v203 = vpop.permute.xlu0 %202
    %vm204 = vcmask 130048
    %v205 = vsel %vm204, %v193, 0
    %v207 = vsel %vm204, %v203, 0
    %209 = vmatprep.subr.mxu0 0.0
    %210 = vmatpush1.xpose.msra.mxu0 %v207
    %211 = vmatprep.subr.mxu0 0.0
    %212 = vmatpush1.xpose.msra.mxu0 0.0
    %213 = vmatprep.subr.mxu0 0.0
    %214 = vmatpush1.xpose.msra.mxu0 0.0
    %215 = vmatprep.subr.mxu0 0.0
    %216 = vmatpush1.xpose.msra.mxu0 0.0
    %217 = vmatprep.subr.mxu0 0.0
    %218 = vmatpush1.xpose.msra.mxu0 0.0
    %219 = vmatprep.subr.mxu0 0.0
    %220 = vmatpush1.xpose.msra.mxu0 0.0
    %221 = vmatprep.subr.mxu0 0.0
    %222 = vmatpush1.xpose.msra.mxu0 0.0
    %223 = vmatprep.subr.mxu0 0.0
    %224 = vmatpush1.xpose.msra.mxu0 0.0
    %225 = vmatprep.subr.mxu0 0.0
    %226 = vmatpush1.xpose.msra.mxu0 0.0
    %227 = vmatprep.subr.mxu0 0.0
    %228 = vmatpush1.xpose.msra.mxu0 0.0
    %229 = vmatprep.subr.mxu0 0.0
    %230 = vmatpush1.xpose.msra.mxu0 0.0
    %231 = vmatprep.subr.mxu0 0.0
    %232 = vmatpush1.xpose.msra.mxu0 0.0
    %233 = vmatprep.subr.mxu0 0.0
    %234 = vmatpush1.xpose.msra.mxu0 0.0
    %235 = vmatprep.subr.mxu0 0.0
    %236 = vmatpush1.xpose.msra.mxu0 0.0
    %237 = vmatprep.subr.mxu0 0.0
    %238 = vmatpush1.xpose.msra.mxu0 0.0
    %239 = vmatprep.subr.mxu0 0.0
    %240 = vmatpush1.xpose.msra.mxu0 0.0
    %241 = vmatprep.subr.mxu0 0.0
    %242 = vmatpush1.xpose.msra.mxu0 0.0
    %243 = vmatprep.subr.mxu0 0.0
    %244 = vmatpush1.xpose.msra.mxu0 0.0
    %245 = vmatprep.subr.mxu0 0.0
    %246 = vmatpush1.xpose.msra.mxu0 0.0
    %247 = vmatprep.subr.mxu0 0.0
    %248 = vmatpush1.xpose.msra.mxu0 0.0
    %249 = vmatprep.subr.mxu0 0.0
    %250 = vmatpush1.xpose.msra.mxu0 0.0
    %251 = vmatprep.subr.mxu0 0.0
    %252 = vmatpush1.xpose.msra.mxu0 0.0
    %253 = vmatprep.subr.mxu0 0.0
    %254 = vmatpush1.xpose.msra.mxu0 0.0
    %255 = vmatprep.subr.mxu0 0.0
    %256 = vmatpush1.xpose.msra.mxu0 0.0
    %257 = vmatprep.subr.mxu0 0.0
    %258 = vmatpush1.xpose.msra.mxu0 0.0
    %259 = vmatprep.subr.mxu0 0.0
    %260 = vmatpush1.xpose.msra.mxu0 0.0
    %261 = vmatprep.subr.mxu0 0.0
    %262 = vmatpush1.xpose.msra.mxu0 0.0
    %263 = vmatprep.subr.mxu0 0.0
    %264 = vmatpush1.xpose.msra.mxu0 0.0
    %265 = vmatprep.subr.mxu0 0.0
    %266 = vmatpush1.xpose.msra.mxu0 0.0
    %267 = vmatprep.subr.mxu0 0.0
    %268 = vmatpush1.xpose.msra.mxu0 0.0
    %269 = vmatprep.subr.mxu0 0.0
    %270 = vmatpush1.xpose.msra.mxu0 0.0
    %271 = vmatprep.subr.mxu0 0.0
    %272 = vmatpush1.xpose.msra.mxu0 0.0
    %273 = vmatprep.mubr.f32.mxu0 0.0
    %274 = vmatmul.mubr.f32.gmra.mrb[0].mxu0 %v205
    %v275 = vpop.f32.mrb[0].mxu0
    %v276 = vadd.f32 0.0, %v275
    %v277 = vpop.f32.mrb[0].mxu0
    %278 = vdwg.mxu0
    %280 = vrot.lane.b32.xlu0 %v198, 112
    %v281 = vpop.permute.xlu0 %280
    %v282 = vsel %vm204, %v198, 0
    %v284 = vsel %vm204, %v281, 0
    %286 = vmatprep.subr.mxu0 0.0
    %287 = vmatpush1.xpose.msra.mxu0 %v284
    %288 = vmatprep.subr.mxu0 0.0
    %289 = vmatpush1.xpose.msra.mxu0 0.0
    %290 = vmatprep.subr.mxu0 0.0
    %291 = vmatpush1.xpose.msra.mxu0 0.0
    %292 = vmatprep.subr.mxu0 0.0
    %293 = vmatpush1.xpose.msra.mxu0 0.0
    %294 = vmatprep.subr.mxu0 0.0
    %295 = vmatpush1.xpose.msra.mxu0 0.0
    %296 = vmatprep.subr.mxu0 0.0
    %297 = vmatpush1.xpose.msra.mxu0 0.0
    %298 = vmatprep.subr.mxu0 0.0
    %299 = vmatpush1.xpose.msra.mxu0 0.0
    %300 = vmatprep.subr.mxu0 0.0
    %301 = vmatpush1.xpose.msra.mxu0 0.0
    %302 = vmatprep.subr.mxu0 0.0
    %303 = vmatpush1.xpose.msra.mxu0 0.0
    %304 = vmatprep.subr.mxu0 0.0
    %305 = vmatpush1.xpose.msra.mxu0 0.0
    %306 = vmatprep.subr.mxu0 0.0
    %307 = vmatpush1.xpose.msra.mxu0 0.0
    %308 = vmatprep.subr.mxu0 0.0
    %309 = vmatpush1.xpose.msra.mxu0 0.0
    %310 = vmatprep.subr.mxu0 0.0
    %311 = vmatpush1.xpose.msra.mxu0 0.0
    %312 = vmatprep.subr.mxu0 0.0
    %313 = vmatpush1.xpose.msra.mxu0 0.0
    %314 = vmatprep.subr.mxu0 0.0
    %315 = vmatpush1.xpose.msra.mxu0 0.0
    %316 = vmatprep.subr.mxu0 0.0
    %317 = vmatpush1.xpose.msra.mxu0 0.0
    %318 = vmatprep.subr.mxu0 0.0
    %319 = vmatpush1.xpose.msra.mxu0 0.0
    %320 = vmatprep.subr.mxu0 0.0
    %321 = vmatpush1.xpose.msra.mxu0 0.0
    %322 = vmatprep.subr.mxu0 0.0
    %323 = vmatpush1.xpose.msra.mxu0 0.0
    %324 = vmatprep.subr.mxu0 0.0
    %325 = vmatpush1.xpose.msra.mxu0 0.0
    %326 = vmatprep.subr.mxu0 0.0
    %327 = vmatpush1.xpose.msra.mxu0 0.0
    %328 = vmatprep.subr.mxu0 0.0
    %329 = vmatpush1.xpose.msra.mxu0 0.0
    %330 = vmatprep.subr.mxu0 0.0
    %331 = vmatpush1.xpose.msra.mxu0 0.0
    %332 = vmatprep.subr.mxu0 0.0
    %333 = vmatpush1.xpose.msra.mxu0 0.0
    %334 = vmatprep.subr.mxu0 0.0
    %335 = vmatpush1.xpose.msra.mxu0 0.0
    %336 = vmatprep.subr.mxu0 0.0
    %337 = vmatpush1.xpose.msra.mxu0 0.0
    %338 = vmatprep.subr.mxu0 0.0
    %339 = vmatpush1.xpose.msra.mxu0 0.0
    %340 = vmatprep.subr.mxu0 0.0
    %341 = vmatpush1.xpose.msra.mxu0 0.0
    %342 = vmatprep.subr.mxu0 0.0
    %343 = vmatpush1.xpose.msra.mxu0 0.0
    %344 = vmatprep.subr.mxu0 0.0
    %345 = vmatpush1.xpose.msra.mxu0 0.0
    %346 = vmatprep.subr.mxu0 0.0
    %347 = vmatpush1.xpose.msra.mxu0 0.0
    %348 = vmatprep.subr.mxu0 0.0
    %349 = vmatpush1.xpose.msra.mxu0 0.0
    %350 = vmatprep.mubr.f32.mxu0 0.0
    %351 = vmatmul.mubr.f32.gmra.mrb[0].mxu0 %v282
    %v352 = vpop.f32.mrb[0].mxu0
    %v353 = vadd.f32 0.0, %v352
    %v354 = vpop.f32.mrb[0].mxu0
    %355 = vdwg.mxu0
    %v356 = vmul.f32 %v276, 0.25
    %v357 = vmul.f32 %v353, 0.25
    %vm358 = vcmask 64512
    %v359 = vsel %vm358, %v356, -inf
    %360 = vmax.xlane.f32.xlu0 %v359
    %v361 = vpop.xlane.xlu0 %360
    %v362 = vsel %vm358, %v357, -inf
    %363 = vmax.xlane.f32.xlu0 %v362
    %v364 = vpop.xlane.xlu0 %363
    %v365 = vsub.f32 %v356, %v361
    %v366 = vsub.f32 %v357, %v364
    %v367 = vmul.f32 %v365, 1.442695
    %v368 = vpow.pop %v367
    %v369 = vmul.f32 %v366, 1.442695
    %v370 = vpow.pop %v369
    %v371 = vsel %vm358, %v368, 0.0
    %372 = vadd.xlane.f32.xlu0 %v371
    %v373 = vpop.xlane.xlu0 %372
    %v374 = vsel %vm358, %v370, 0.0
    %375 = vadd.xlane.f32.xlu0 %v374
    %v376 = vpop.xlane.xlu0 %375
    %v377 = vrcp.pop %v373
    %v378 = vmul.f32 %v368, %v377
    %v379 = vrcp.pop %v376
    %v380 = vmul.f32 %v370, %v379
    %v381 = vsel %vm358, %v378, 0.0
    %382 = vadd.xlane.f32.xlu0 %v381
    %v383 = vpop.xlane.xlu0 %382
    %v384 = vsel %vm358, %v380, 0.0
    %385 = vadd.xlane.f32.xlu0 %v384
    %v386 = vpop.xlane.xlu0 %385
    %vm387 = vcmask 392448
    %v388 = vsel %vm387, %v193, 0.0
    %v389 = vrot.slane %v388, 4
    %v390 = vadd.f32 %v388, %v389
    %v391 = vrot.slane %v390, 2
    %v392 = vadd.f32 %v390, %v391
    %v393 = vrot.slane %v392, 1
    %v394 = vadd.f32 %v392, %v393
    %v395 = vsel %vm387, %v198, 0.0
    %v396 = vrot.slane %v395, 4
    %v397 = vadd.f32 %v395, %v396
    %v398 = vrot.slane %v397, 2
    %v399 = vadd.f32 %v397, %v398
    %v400 = vrot.slane %v399, 1
    %v401 = vadd.f32 %v399, %v400
    %v402 = vmul.f32 %v383, %v394
    %v403 = vmul.f32 %v386, %v401
    %v404 = vld [vmem:[#allocation7] sm:$0xff]
    %v405 = vld [vmem:[#allocation7 + $0x8] sm:$0xff]
    %v406 = vld [vmem:[%s4] sm:$0x1]
    %v408 = vlaneseq
    %v409 = vshrl.u32 %v408, 7
    %v410 = vsub.s32 0, %v409
    %v411 = vrot.slane %v406, %v410
    %415 = vrot.lane.b32.xlu0 %v402, 96
    %v416 = vpop.permute.xlu0 %415
    %417 = vrot.lane.b32.xlu0 %v403, 96
    %v418 = vpop.permute.xlu0 %417
    %v419 = vsel %vm204, %v416, 0
    %v421 = vsel %vm204, %v418, 0
    %423 = vmatprep.subr.mxu0 0.0
    %424 = vmatpush1.msra.mxu0 %v404
    %425 = vmatprep.subr.mxu0 0.0
    %426 = vmatpush1.msra.mxu0 %v405
    %427 = vmatprep.subr.mxu0 0.0
    %428 = vmatpush1.msra.mxu0 0.0
    %429 = vmatprep.subr.mxu0 0.0
    %430 = vmatpush1.msra.mxu0 0.0
    %431 = vmatprep.subr.mxu0 0.0
    %432 = vmatpush1.msra.mxu0 0.0
    %433 = vmatprep.subr.mxu0 0.0
    %434 = vmatpush1.msra.mxu0 0.0
    %435 = vmatprep.subr.mxu0 0.0
    %436 = vmatpush1.msra.mxu0 0.0
    %437 = vmatprep.subr.mxu0 0.0
    %438 = vmatpush1.msra.mxu0 0.0
    %439 = vmatprep.subr.mxu0 0.0
    %440 = vmatpush1.msra.mxu0 0.0
    %441 = vmatprep.subr.mxu0 0.0
    %442 = vmatpush1.msra.mxu0 0.0
    %443 = vmatprep.subr.mxu0 0.0
    %444 = vmatpush1.msra.mxu0 0.0
    %445 = vmatprep.subr.mxu0 0.0
    %446 = vmatpush1.msra.mxu0 0.0
    %447 = vmatprep.subr.mxu0 0.0
    %448 = vmatpush1.msra.mxu0 0.0
    %449 = vmatprep.subr.mxu0 0.0
    %450 = vmatpush1.msra.mxu0 0.0
    %451 = vmatprep.subr.mxu0 0.0
    %452 = vmatpush1.msra.mxu0 0.0
    %453 = vmatprep.subr.mxu0 0.0
    %454 = vmatpush1.msra.mxu0 0.0
    %455 = vmatprep.subr.mxu0 0.0
    %456 = vmatpush1.msra.mxu0 0.0
    %457 = vmatprep.subr.mxu0 0.0
    %458 = vmatpush1.msra.mxu0 0.0
    %459 = vmatprep.subr.mxu0 0.0
    %460 = vmatpush1.msra.mxu0 0.0
    %461 = vmatprep.subr.mxu0 0.0
    %462 = vmatpush1.msra.mxu0 0.0
    %463 = vmatprep.subr.mxu0 0.0
    %464 = vmatpush1.msra.mxu0 0.0
    %465 = vmatprep.subr.mxu0 0.0
    %466 = vmatpush1.msra.mxu0 0.0
    %467 = vmatprep.subr.mxu0 0.0
    %468 = vmatpush1.msra.mxu0 0.0
    %469 = vmatprep.subr.mxu0 0.0
    %470 = vmatpush1.msra.mxu0 0.0
    %471 = vmatprep.subr.mxu0 0.0
    %472 = vmatpush1.msra.mxu0 0.0
    %473 = vmatprep.subr.mxu0 0.0
    %474 = vmatpush1.msra.mxu0 0.0
    %475 = vmatprep.subr.mxu0 0.0
    %476 = vmatpush1.msra.mxu0 0.0
    %477 = vmatprep.subr.mxu0 0.0
    %478 = vmatpush1.msra.mxu0 0.0
    %479 = vmatprep.subr.mxu0 0.0
    %480 = vmatpush1.msra.mxu0 0.0
    %481 = vmatprep.subr.mxu0 0.0
    %482 = vmatpush1.msra.mxu0 0.0
    %483 = vmatprep.subr.mxu0 0.0
    %484 = vmatpush1.msra.mxu0 0.0
    %485 = vmatprep.subr.mxu0 0.0
    %486 = vmatpush1.msra.mxu0 0.0
    %487 = vmatprep.mubr.f32.mxu0 0.0
    %488 = vmatmul.mubr.f32.gmra.mrb[0].mxu0 %v419
    %v489 = vpop.f32.mrb[0].mxu0
    %v490 = vadd.f32 %v411, %v489
    %v491 = vpop.f32.mrb[0].mxu0
    %492 = vmatprep.mubr.f32.mxu0 0.0
    %493 = vmatmul.mubr.f32.gmra.mrb[0].mxu0 %v421
    %v494 = vpop.f32.mrb[0].mxu0
    %v495 = vadd.f32 %v411, %v494
    %v496 = vpop.f32.mrb[0].mxu0
    %497 = vdwg.mxu0
    %v498 = vadd.f32 %v106, %v490
    %v499 = vadd.f32 %v107, %v495
    %v500 = vsel %vm119, %v498, 0.0
    %v501 = vsel %vm119, %v499, 0.0
    %v502 = vadd.f32 %v500, %v501
    %v503 = vrot.slane %v502, 4
    %v504 = vadd.f32 %v502, %v503
    %v505 = vrot.slane %v504, 2
    %v506 = vadd.f32 %v504, %v505
    %v507 = vrot.slane %v506, 1
    %v508 = vadd.f32 %v506, %v507
    %v509 = vrcp.pop 16.0
    %v510 = vmul.f32 %v508, %v509
    %v511 = vsub.f32 %v498, %v510
    %v512 = vsub.f32 %v499, %v510
    %v513 = vmul.f32 %v511, %v511
    %v514 = vmul.f32 %v512, %v512
    %v515 = vsel %vm119, %v513, 0.0
    %v516 = vsel %vm119, %v514, 0.0
    %v517 = vadd.f32 %v515, %v516
    %v518 = vrot.slane %v517, 4
    %v519 = vadd.f32 %v517, %v518
    %v520 = vrot.slane %v519, 2
    %v521 = vadd.f32 %v519, %v520
    %v522 = vrot.slane %v521, 1
    %v523 = vadd.f32 %v521, %v522
    %v524 = vmul.f32 %v523, %v509
    %v525 = vadd.f32 %v524, 1e-05
    %v526 = vrsqrt.pop %v525
    %v527 = vmul.f32 %v511, %v526
    %v528 = vmul.f32 %v512, %v526
    %v529 = vld [vmem:[%s5] sm:$0x1]
    %v531 = vlaneseq
    %v532 = vshrl.u32 %v531, 7
    %v533 = vsub.s32 0, %v532
    %v534 = vrot.slane %v529, %v533
    %v536 = vmul.f32 %v527, %v534
    %v537 = vmul.f32 %v528, %v534
    %v538 = vld [vmem:[%s6] sm:$0x1]
    %v540 = vlaneseq
    %v541 = vshrl.u32 %v540, 7
    %v542 = vsub.s32 0, %v541
    %v543 = vrot.slane %v538, %v542
    %v545 = vadd.f32 %v536, %v543
    %v546 = vadd.f32 %v537, %v543
    %v547 = vld [vmem:[#allocation8] sm:$0xff]
    %v548 = vld [vmem:[#allocation8 + $0x8] sm:$0xff]
    %v549 = vld [vmem:[#allocation8 + $0x10] sm:$0xff]
    %v550 = vld [vmem:[#allocation8 + $0x18] sm:$0xff]
    %v551 = vld [vmem:[#allocation8 + $0x20] sm:$0xff]
    %v552 = vld [vmem:[#allocation8 + $0x28] sm:$0xff]
    %v553 = vld [vmem:[#allocation8 + $0x30] sm:$0xff]
    %v554 = vld [vmem:[#allocation8 + $0x38] sm:$0xff]
    %v555 = vld [vmem:[%s10] sm:$0x3]
    %v557 = vlaneseq
    %v558 = vshrl.u32 %v557, 7
    %v559 = vsub.s32 0, %v558
    %v560 = vrot.slane %v555, %v559
    %v561 = vlaneseq
    %v562 = vshrl.u32 %v561, 7
    %v563 = vsub.s32 1, %v562
    %v564 = vrot.slane %v555, %v563
    %v568 = vsel %vm119, %v545, 0
    %v571 = vsel %vm119, %v546, 0
    %573 = vmatprep.subr.mxu0 %v548
    %574 = vmatpush1.msra.mxu0 %v547
    %575 = vmatprep.subr.mxu0 %v550
    %576 = vmatpush1.msra.mxu0 %v549
    %577 = vmatprep.subr.mxu0 %v552
    %578 = vmatpush1.msra.mxu0 %v551
    %579 = vmatprep.subr.mxu0 %v554
    %580 = vmatpush1.msra.mxu0 %v553
    %581 = vmatprep.subr.mxu0 0.0
    %582 = vmatpush1.msra.mxu0 0.0
    %583 = vmatprep.subr.mxu0 0.0
    %584 = vmatpush1.msra.mxu0 0.0
    %585 = vmatprep.subr.mxu0 0.0
    %586 = vmatpush1.msra.mxu0 0.0
    %587 = vmatprep.subr.mxu0 0.0
    %588 = vmatpush1.msra.mxu0 0.0
    %589 = vmatprep.subr.mxu0 0.0
    %590 = vmatpush1.msra.mxu0 0.0
    %591 = vmatprep.subr.mxu0 0.0
    %592 = vmatpush1.msra.mxu0 0.0
    %593 = vmatprep.subr.mxu0 0.0
    %594 = vmatpush1.msra.mxu0 0.0
    %595 = vmatprep.subr.mxu0 0.0
    %596 = vmatpush1.msra.mxu0 0.0
    %597 = vmatprep.subr.mxu0 0.0
    %598 = vmatpush1.msra.mxu0 0.0
    %599 = vmatprep.subr.mxu0 0.0
    %600 = vmatpush1.msra.mxu0 0.0
    %601 = vmatprep.subr.mxu0 0.0
    %602 = vmatpush1.msra.mxu0 0.0
    %603 = vmatprep.subr.mxu0 0.0
    %604 = vmatpush1.msra.mxu0 0.0
    %605 = vmatprep.subr.mxu0 0.0
    %606 = vmatpush1.msra.mxu0 0.0
    %607 = vmatprep.subr.mxu0 0.0
    %608 = vmatpush1.msra.mxu0 0.0
    %609 = vmatprep.subr.mxu0 0.0
    %610 = vmatpush1.msra.mxu0 0.0
    %611 = vmatprep.subr.mxu0 0.0
    %612 = vmatpush1.msra.mxu0 0.0
    %613 = vmatprep.subr.mxu0 0.0
    %614 = vmatpush1.msra.mxu0 0.0
    %615 = vmatprep.subr.mxu0 0.0
    %616 = vmatpush1.msra.mxu0 0.0
    %617 = vmatprep.subr.mxu0 0.0
    %618 = vmatpush1.msra.mxu0 0.0
    %619 = vmatprep.subr.mxu0 0.0
    %620 = vmatpush1.msra.mxu0 0.0
    %621 = vmatprep.subr.mxu0 0.0
    %622 = vmatpush1.msra.mxu0 0.0
    %623 = vmatprep.subr.mxu0 0.0
    %624 = vmatpush1.msra.mxu0 0.0
    %625 = vmatprep.subr.mxu0 0.0
    %626 = vmatpush1.msra.mxu0 0.0
    %627 = vmatprep.subr.mxu0 0.0
    %628 = vmatpush1.msra.mxu0 0.0
    %629 = vmatprep.subr.mxu0 0.0
    %630 = vmatpush1.msra.mxu0 0.0
    %631 = vmatprep.subr.mxu0 0.0
    %632 = vmatpush1.msra.mxu0 0.0
    %633 = vmatprep.subr.mxu0 0.0
    %634 = vmatpush1.msra.mxu0 0.0
    %635 = vmatprep.subr.mxu0 0.0
    %636 = vmatpush1.msra.mxu0 0.0
    %637 = vmatprep.mubr.f32.mxu0 0.0
    %638 = vmatmul.mubr.f32.gmra.mrb[0].mxu0 %v568
    %v639 = vpop.f32.mrb[0].mxu0
    %v640 = vadd.f32 %v560, %v639
    %v641 = vpop.f32.mrb[0].mxu0
    %v642 = vadd.f32 %v564, %v641
    %643 = vmatprep.mubr.f32.mxu0 0.0
    %644 = vmatmul.mubr.f32.gmra.mrb[0].mxu0 %v571
    %v645 = vpop.f32.mrb[0].mxu0
    %v646 = vadd.f32 %v560, %v645
    %v647 = vpop.f32.mrb[0].mxu0
    %v648 = vadd.f32 %v564, %v647
    %649 = vdwg.mxu0
    %v650 = vsub.f32 0.0, %v640
    %v651 = vsub.f32 0.0, %v642
    %v652 = vsub.f32 0.0, %v646
    %v653 = vsub.f32 0.0, %v648
    %v654 = vmul.f32 %v650, 1.442695
    %v655 = vpow.pop %v654
    %v656 = vmul.f32 %v651, 1.442695
    %v657 = vpow.pop %v656
    %v658 = vmul.f32 %v652, 1.442695
    %v659 = vpow.pop %v658
    %v660 = vmul.f32 %v653, 1.442695
    %v661 = vpow.pop %v660
    %v662 = vadd.f32 %v655, 1.0
    %v663 = vadd.f32 %v657, 1.0
    %v664 = vadd.f32 %v659, 1.0
    %v665 = vadd.f32 %v661, 1.0
    %v666 = vrcp.pop %v662
    %v667 = vmul.f32 1.0, %v666
    %v668 = vrcp.pop %v663
    %v669 = vmul.f32 1.0, %v668
    %v670 = vrcp.pop %v664
    %v671 = vmul.f32 1.0, %v670
    %v672 = vrcp.pop %v665
    %v673 = vmul.f32 1.0, %v672
    %v674 = vld [vmem:[%s11] sm:$0xff]
    %v675 = vld [vmem:[%s11 + $0x8] sm:$0xff]
    %v676 = vld [vmem:[%s11 + $0x10] sm:$0xff]
    %v677 = vld [vmem:[%s11 + $0x18] sm:$0xff]
    %v678 = vld [vmem:[%s11 + $0x20] sm:$0xff]
    %v679 = vld [vmem:[%s11 + $0x28] sm:$0xff]
    %v680 = vld [vmem:[%s11 + $0x30] sm:$0xff]
    %v681 = vld [vmem:[%s11 + $0x38] sm:$0xff]
    %v682 = vld [vmem:[%s11 + $0x40] sm:$0xff]
    %v683 = vld [vmem:[%s11 + $0x48] sm:$0xff]
    %v684 = vld [vmem:[%s11 + $0x50] sm:$0xff]
    %v685 = vld [vmem:[%s11 + $0x58] sm:$0xff]
    %v686 = vld [vmem:[%s11 + $0x60] sm:$0xff]
    %v687 = vld [vmem:[%s11 + $0x68] sm:$0xff]
    %v688 = vld [vmem:[%s11 + $0x70] sm:$0xff]
    %v689 = vld [vmem:[%s11 + $0x78] sm:$0xff]
    %v690 = vld [vmem:[%s11 + $0x80] sm:$0xff]
    %v691 = vld [vmem:[%s11 + $0x88] sm:$0xff]
    %v692 = vld [vmem:[%s11 + $0x90] sm:$0xff]
    %v693 = vld [vmem:[%s11 + $0x98] sm:$0xff]
    %v694 = vld [vmem:[%s12] sm:$0x1]
    %v696 = vlaneseq
    %v697 = vshrl.u32 %v696, 7
    %v698 = vsub.s32 0, %v697
    %v699 = vrot.slane %v694, %v698
    %v702 = vsel %vm119, %v669, 0
    %v705 = vsel %vm119, %v673, 0
    %707 = vmatprep.subr.mxu0 0.0
    %708 = vmatpush1.msra.mxu0 %v674
    %709 = vmatprep.subr.mxu0 0.0
    %710 = vmatpush1.msra.mxu0 %v675
    %711 = vmatprep.subr.mxu0 0.0
    %712 = vmatpush1.msra.mxu0 %v676
    %713 = vmatprep.subr.mxu0 0.0
    %714 = vmatpush1.msra.mxu0 %v677
    %715 = vmatprep.subr.mxu0 0.0
    %716 = vmatpush1.msra.mxu0 %v678
    %717 = vmatprep.subr.mxu0 0.0
    %718 = vmatpush1.msra.mxu0 %v679
    %719 = vmatprep.subr.mxu0 0.0
    %720 = vmatpush1.msra.mxu0 %v680
    %721 = vmatprep.subr.mxu0 0.0
    %722 = vmatpush1.msra.mxu0 %v681
    %723 = vmatprep.subr.mxu0 0.0
    %724 = vmatpush1.msra.mxu0 %v682
    %725 = vmatprep.subr.mxu0 0.0
    %726 = vmatpush1.msra.mxu0 %v683
    %727 = vmatprep.subr.mxu0 0.0
    %728 = vmatpush1.msra.mxu0 %v684
    %729 = vmatprep.subr.mxu0 0.0
    %730 = vmatpush1.msra.mxu0 %v685
    %731 = vmatprep.subr.mxu0 0.0
    %732 = vmatpush1.msra.mxu0 %v686
    %733 = vmatprep.subr.mxu0 0.0
    %734 = vmatpush1.msra.mxu0 %v687
    %735 = vmatprep.subr.mxu0 0.0
    %736 = vmatpush1.msra.mxu0 %v688
    %737 = vmatprep.subr.mxu0 0.0
    %738 = vmatpush1.msra.mxu0 %v689
    %739 = vmatprep.subr.mxu0 0.0
    %740 = vmatpush1.msra.mxu0 %v690
    %741 = vmatprep.subr.mxu0 0.0
    %742 = vmatpush1.msra.mxu0 %v691
    %743 = vmatprep.subr.mxu0 0.0
    %744 = vmatpush1.msra.mxu0 %v692
    %745 = vmatprep.subr.mxu0 0.0
    %746 = vmatpush1.msra.mxu0 %v693
    %747 = vmatprep.subr.mxu0 0.0
    %748 = vmatpush1.msra.mxu0 0.0
    %749 = vmatprep.subr.mxu0 0.0
    %750 = vmatpush1.msra.mxu0 0.0
    %751 = vmatprep.subr.mxu0 0.0
    %752 = vmatpush1.msra.mxu0 0.0
    %753 = vmatprep.subr.mxu0 0.0
    %754 = vmatpush1.msra.mxu0 0.0
    %755 = vmatprep.subr.mxu0 0.0
    %756 = vmatpush1.msra.mxu0 0.0
    %757 = vmatprep.subr.mxu0 0.0
    %758 = vmatpush1.msra.mxu0 0.0
    %759 = vmatprep.subr.mxu0 0.0
    %760 = vmatpush1.msra.mxu0 0.0
    %761 = vmatprep.subr.mxu0 0.0
    %762 = vmatpush1.msra.mxu0 0.0
    %763 = vmatprep.subr.mxu0 0.0
    %764 = vmatpush1.msra.mxu0 0.0
    %765 = vmatprep.subr.mxu0 0.0
    %766 = vmatpush1.msra.mxu0 0.0
    %767 = vmatprep.subr.mxu0 0.0
    %768 = vmatpush1.msra.mxu0 0.0
    %769 = vmatprep.subr.mxu0 0.0
    %770 = vmatpush1.msra.mxu0 0.0
    %771 = vmatprep.mubr.f32.mxu0 %v702
    %772 = vmatmul.mubr.f32.gmra.mrb[0].mxu0 %v667
    %v773 = vpop.f32.mrb[0].mxu0
    %v774 = vadd.f32 %v699, %v773
    %v775 = vpop.f32.mrb[0].mxu0
    %776 = vmatprep.mubr.f32.mxu0 %v705
    %777 = vmatmul.mubr.f32.gmra.mrb[0].mxu0 %v671
    %v778 = vpop.f32.mrb[0].mxu0
    %v779 = vadd.f32 %v699, %v778
    %v780 = vpop.f32.mrb[0].mxu0
    %781 = vdwg.mxu0
    %v782 = vsub.f32 0.0, %v774
    %v783 = vsub.f32 0.0, %v779
    %v784 = vmul.f32 %v782, 1.442695
    %v785 = vpow.pop %v784
    %v786 = vmul.f32 %v783, 1.442695
    %v787 = vpow.pop %v786
    %v788 = vadd.f32 %v785, 1.0
    %v789 = vadd.f32 %v787, 1.0
    %v790 = vrcp.pop %v788
    %v791 = vmul.f32 1.0, %v790
    %v792 = vrcp.pop %v789
    %v793 = vmul.f32 1.0, %v792
    %v794 = vld [vmem:[%s13] sm:$0xff]
    %v795 = vld [vmem:[%s13 + $0x8] sm:$0xff]
    %v796 = vld [vmem:[%s13 + $0x10] sm:$0xff]
    %v797 = vld [vmem:[%s13 + $0x18] sm:$0xff]
    %v798 = vld [vmem:[%s13 + $0x20] sm:$0xff]
    %v799 = vld [vmem:[%s13 + $0x28] sm:$0xff]
    %v800 = vld [vmem:[%s13 + $0x30] sm:$0xff]
    %v801 = vld [vmem:[%s13 + $0x38] sm:$0xff]
    %v802 = vld [vmem:[%s13 + $0x40] sm:$0xff]
    %v803 = vld [vmem:[%s13 + $0x48] sm:$0xff]
    %v804 = vld [vmem:[%s13 + $0x50] sm:$0xff]
    %v805 = vld [vmem:[%s13 + $0x58] sm:$0xff]
    %v806 = vld [vmem:[%s14] sm:$0x1]
    %v808 = vlaneseq
    %v809 = vshrl.u32 %v808, 7
    %v810 = vsub.s32 0, %v809
    %v811 = vrot.slane %v806, %v810
    %vm813 = vcmask 785408
    %v815 = vsel %vm813, %v791, 0
    %v818 = vsel %vm813, %v793, 0
    %820 = vmatprep.subr.mxu0 0.0
    %821 = vmatpush1.msra.mxu0 %v794
    %822 = vmatprep.subr.mxu0 0.0
    %823 = vmatpush1.msra.mxu0 %v795
    %824 = vmatprep.subr.mxu0 0.0
    %825 = vmatpush1.msra.mxu0 %v796
    %826 = vmatprep.subr.mxu0 0.0
    %827 = vmatpush1.msra.mxu0 %v797
    %828 = vmatprep.subr.mxu0 0.0
    %829 = vmatpush1.msra.mxu0 %v798
    %830 = vmatprep.subr.mxu0 0.0
    %831 = vmatpush1.msra.mxu0 %v799
    %832 = vmatprep.subr.mxu0 0.0
    %833 = vmatpush1.msra.mxu0 %v800
    %834 = vmatprep.subr.mxu0 0.0
    %835 = vmatpush1.msra.mxu0 %v801
    %836 = vmatprep.subr.mxu0 0.0
    %837 = vmatpush1.msra.mxu0 %v802
    %838 = vmatprep.subr.mxu0 0.0
    %839 = vmatpush1.msra.mxu0 %v803
    %840 = vmatprep.subr.mxu0 0.0
    %841 = vmatpush1.msra.mxu0 %v804
    %842 = vmatprep.subr.mxu0 0.0
    %843 = vmatpush1.msra.mxu0 %v805
    %844 = vmatprep.subr.mxu0 0.0
    %845 = vmatpush1.msra.mxu0 0.0
    %846 = vmatprep.subr.mxu0 0.0
    %847 = vmatpush1.msra.mxu0 0.0
    %848 = vmatprep.subr.mxu0 0.0
    %849 = vmatpush1.msra.mxu0 0.0
    %850 = vmatprep.subr.mxu0 0.0
    %851 = vmatpush1.msra.mxu0 0.0
    %852 = vmatprep.subr.mxu0 0.0
    %853 = vmatpush1.msra.mxu0 0.0
    %854 = vmatprep.subr.mxu0 0.0
    %855 = vmatpush1.msra.mxu0 0.0
    %856 = vmatprep.subr.mxu0 0.0
    %857 = vmatpush1.msra.mxu0 0.0
    %858 = vmatprep.subr.mxu0 0.0
    %859 = vmatpush1.msra.mxu0 0.0
    %860 = vmatprep.subr.mxu0 0.0
    %861 = vmatpush1.msra.mxu0 0.0
    %862 = vmatprep.subr.mxu0 0.0
    %863 = vmatpush1.msra.mxu0 0.0
    %864 = vmatprep.subr.mxu0 0.0
    %865 = vmatpush1.msra.mxu0 0.0
    %866 = vmatprep.subr.mxu0 0.0
    %867 = vmatpush1.msra.mxu0 0.0
    %868 = vmatprep.subr.mxu0 0.0
    %869 = vmatpush1.msra.mxu0 0.0
    %870 = vmatprep.subr.mxu0 0.0
    %871 = vmatpush1.msra.mxu0 0.0
    %872 = vmatprep.subr.mxu0 0.0
    %873 = vmatpush1.msra.mxu0 0.0
    %874 = vmatprep.subr.mxu0 0.0
    %875 = vmatpush1.msra.mxu0 0.0
    %876 = vmatprep.subr.mxu0 0.0
    %877 = vmatpush1.msra.mxu0 0.0
    %878 = vmatprep.subr.mxu0 0.0
    %879 = vmatpush1.msra.mxu0 0.0
    %880 = vmatprep.subr.mxu0 0.0
    %881 = vmatpush1.msra.mxu0 0.0
    %882 = vmatprep.subr.mxu0 0.0
    %883 = vmatpush1.msra.mxu0 0.0
    %884 = vmatprep.mubr.f32.mxu0 0.0
    %885 = vmatmul.mubr.f32.gmra.mrb[0].mxu0 %v815
    %v886 = vpop.f32.mrb[0].mxu0
    %v887 = vadd.f32 %v811, %v886
    %v888 = vpop.f32.mrb[0].mxu0
    %889 = vmatprep.mubr.f32.mxu0 0.0
    %890 = vmatmul.mubr.f32.gmra.mrb[0].mxu0 %v818
    %v891 = vpop.f32.mrb[0].mxu0
    %v892 = vadd.f32 %v811, %v891
    %v893 = vpop.f32.mrb[0].mxu0
    %894 = vdwg.mxu0
    %v895 = vsub.f32 0.0, %v887
    %v896 = vsub.f32 0.0, %v892
    %v897 = vmul.f32 %v895, 1.442695
    %v898 = vpow.pop %v897
    %v899 = vmul.f32 %v896, 1.442695
    %v900 = vpow.pop %v899
    %v901 = vadd.f32 %v898, 1.0
    %v902 = vadd.f32 %v900, 1.0
    %v903 = vrcp.pop %v901
    %v904 = vmul.f32 1.0, %v903
    %v905 = vrcp.pop %v902
    %v906 = vmul.f32 1.0, %v905
    %v907 = vadd.f32 %v904, %v545
    %v908 = vadd.f32 %v906, %v546
    %v909 = vsel %vm119, %v907, 0.0
    %v910 = vsel %vm119, %v908, 0.0
    %v911 = vadd.f32 %v909, %v910
    %v912 = vrot.slane %v911, 4
    %v913 = vadd.f32 %v911, %v912
    %v914 = vrot.slane %v913, 2
    %v915 = vadd.f32 %v913, %v914
    %v916 = vrot.slane %v915, 1
    %v917 = vadd.f32 %v915, %v916
    %v918 = vmul.f32 %v917, %v509
    %v919 = vsub.f32 %v907, %v918
    %v920 = vsub.f32 %v908, %v918
    %v921 = vmul.f32 %v919, %v919
    %v922 = vmul.f32 %v920, %v920
    %v923 = vsel %vm119, %v921, 0.0
    %v924 = vsel %vm119, %v922, 0.0
    %v925 = vadd.f32 %v923, %v924
    %v926 = vrot.slane %v925, 4
    %v927 = vadd.f32 %v925, %v926
    %v928 = vrot.slane %v927, 2
    %v929 = vadd.f32 %v927, %v928
    %v930 = vrot.slane %v929, 1
    %v931 = vadd.f32 %v929, %v930
    %v932 = vmul.f32 %v931, %v509
    %v933 = vadd.f32 %v932, 1e-05
    %v934 = vrsqrt.pop %v933
    %v935 = vmul.f32 %v919, %v934
    %v936 = vmul.f32 %v920, %v934
    %v937 = vld [vmem:[%s7] sm:$0x1]
    %v939 = vlaneseq
    %v940 = vshrl.u32 %v939, 7
    %v941 = vsub.s32 0, %v940
    %v942 = vrot.slane %v937, %v941
    %v944 = vmul.f32 %v935, %v942
    %v945 = vmul.f32 %v936, %v942
    %v946 = vld [vmem:[%s8] sm:$0x1]
    %v948 = vlaneseq
    %v949 = vshrl.u32 %v948, 7
    %v950 = vsub.s32 0, %v949
    %v951 = vrot.slane %v946, %v950
    %v953 = vadd.f32 %v944, %v951
    %v954 = vadd.f32 %v945, %v951
    %955 = vst.msk [vmem:[#allocation10] sm:$0xff] %vm119, %v953
    %956 = vst.msk [vmem:[#allocation10 + $0x8] sm:$0xff] %vm119, %v954
    // Predicated region
    $region78: #{tpu_custom_call.1} parent=1 // pred_check
      _
    $region79: #{tpu_custom_call.1} parent=1 // pred_check_branch
      %958 = sbr.rel (0) target = $region81
    $region80: #{tpu_custom_call.1} parent=1 // pred_region
      %s960 = ssub.s32 256, 256
      %961 = vsyncadd [#allocation4], %s960
      %s962 = sshll.u32 [#allocation10], 4
      %s963 = int_to_ptr.vmem [resolvable:$true] %s962
      %968 = dma.vmem_to_hbm [thread:$0]  %s963, 256, %s15, [#allocation4], 128, 128, 8
    $region81: #{tpu_custom_call.1} parent=1 // pred_fallthru
      _
    // Predicated region
    $region82: #{tpu_custom_call.1} parent=1 // pred_check
      _
    $region83: #{tpu_custom_call.1} parent=1 // pred_check_branch
      %970 = sbr.rel (0) target = $region85
    $region84: #{tpu_custom_call.1} parent=1 // pred_region
      %971 = dma.done [#allocation4], 256
    $region85: #{tpu_custom_call.1} parent=1 // pred_fallthru
      _
    %972 = vsyncpa [#allocation3], 1
    %973 = vsyncpa [#allocation6], 1
    %974 = vsyncpa [#allocation9], 1
    %975 = vsyncpa [#allocation4], 1

</llo_original>
